<compile_context>
chip_gen: v5e
topology: v5e:2x2
jax: 0.10.0
libtpu: 0.0.40
codegen_flags: <defaults>
</compile_context>

<pallas_src>
import functools
import math

import jax
import jax.numpy as jnp
from jax import lax
from jax.experimental import pallas as pl
from jax.experimental.pallas import tpu as pltpu


def _label_smoothing_kernel(x_ref, tgt_ref, mask_ref, num_ref, acc_ref,
                            *, smooth_val, delta, k_const):
    i = pl.program_id(1)                      # reduction (row-block) axis

    @pl.when(i == 0)
    def _():
        acc_ref[...] = jnp.zeros_like(acc_ref)

    x = x_ref[...].astype(jnp.float32)        # (TR, V) upcast in-kernel
    tgt = tgt_ref[...]                        # (TR, 1) int32
    mask = mask_ref[...]                      # (TR, 1) float32

    col = lax.broadcasted_iota(jnp.int32, x.shape, 1)
    x_at_tgt = jnp.sum(jnp.where(col == tgt, x, 0.0), axis=1, keepdims=True)
    rowsum_x = jnp.sum(x, axis=1, keepdims=True)

    # Closed-form KL row loss; constant K folded at trace time.
    row_loss = k_const - smooth_val * rowsum_x - delta * x_at_tgt      # (TR, 1)
    acc_ref[...] += row_loss * mask            # lane-0 VPU add, no reduce per step

    @pl.when(i == pl.num_programs(1) - 1)
    def _():
        total = jnp.sum(acc_ref[...])                                   # epilogue reduce
        num_ref[...] = jnp.full(num_ref.shape, total, dtype=jnp.float32)


def _round_up(v, m):
    return (v + m - 1) // m * m


def label_smoothing_loss(inp, target, mask, *, smoothing=0.1,
                         tile_rows=None, num_row_splits=2):
    """inp: [B, T, V] log-probs; target: [B, T] int; mask: [B, T] float."""
    confidence = 1.0 - float(smoothing)

    # Glue (mirrors the PyTorch reshaping / truncation) stays in plain JAX.
    if target.ndim == 3:
        target = target.reshape(-1, target.shape[2])
        mask = mask.reshape(-1, mask.shape[2])
    T = inp.shape[1]
    target = target[:, :T]
    mask = mask[:, :T]

    V = inp.shape[-1]
    x = inp.reshape(-1, V)                           # native dtype; cast inside kernel
    tgt = target.reshape(-1, 1).astype(jnp.int32)
    msk = mask.reshape(-1, 1).astype(jnp.float32)
    N = x.shape[0]

    # Denominator is trivial — compute in plain JAX (unpadded mask).
    denom = jnp.sum(msk)

    # ---- tiling: VMEM-filling row tile, rows split across num_row_splits ----
    P = int(num_row_splits)
    itemsize = jnp.dtype(x.dtype).itemsize
    row_align = max(8, 32 // max(1, itemsize))       # 8 for f32, 16 for bf16, 32 for int8
    if tile_rows is None:
        target_block_f32 = 2 * 1024 * 1024           # ~2 MiB of f32 compute per grid step
        tile_rows = max(row_align,
                        min(2048, (target_block_f32 // (V * 4)) // row_align * row_align))
    else:
        tile_rows = max(row_align, _round_up(int(tile_rows), row_align))
    rows_per_split = -(-N // P)                      # cdiv
    tile_rows = min(tile_rows, _round_up(rows_per_split, row_align))
    blocks_per_split = -(-rows_per_split // tile_rows)
    n_pad = P * blocks_per_split * tile_rows

    if n_pad > N:                                    # zero-mask rows contribute nothing
        x = jnp.pad(x, ((0, n_pad - N), (0, 0)))
        tgt = jnp.pad(tgt, ((0, n_pad - N), (0, 0)))
        msk = jnp.pad(msk, ((0, n_pad - N), (0, 0)))

    smooth_val = float(smoothing) / (V - 1)
    k_const = 0.0
    if smooth_val > 0.0:
        k_const += (V - 1) * smooth_val * math.log(smooth_val)
    if confidence > 0.0:
        k_const += confidence * math.log(confidence)
    delta = confidence - smooth_val

    kernel = functools.partial(_label_smoothing_kernel,
                               smooth_val=smooth_val, delta=delta, k_const=k_const)

    # VMEM budget: double-buffered x + f32 temporaries + lane-padded (TR,1) columns.
    x_block = tile_rows * V * itemsize
    f32_block = tile_rows * V * 4
    col_block = tile_rows * 128 * 4
    vmem_est = 2 * x_block + 4 * f32_block + 5 * col_block + (1 << 16)
    vmem_limit = int(min(56 * 2**20, max(32 * 2**20, 2 * vmem_est)))

    partials = pl.pallas_call(
        kernel,
        out_shape=jax.ShapeDtypeStruct((P, 8, 128), jnp.float32),
        grid_spec=pltpu.PrefetchScalarGridSpec(
            num_scalar_prefetch=0,
            grid=(P, blocks_per_split),
            in_specs=[
                pl.BlockSpec((tile_rows, V),
                             lambda p, i: (p * blocks_per_split + i, 0)),
                pl.BlockSpec((tile_rows, 1),
                             lambda p, i: (p * blocks_per_split + i, 0)),
                pl.BlockSpec((tile_rows, 1),
                             lambda p, i: (p * blocks_per_split + i, 0)),
            ],
            out_specs=pl.BlockSpec((1, 8, 128), lambda p, i: (p, 0, 0)),
            scratch_shapes=[pltpu.VMEM((tile_rows, 1), jnp.float32)],
        ),
        compiler_params=pltpu.CompilerParams(
            dimension_semantics=("parallel", "arbitrary"),
            vmem_limit_bytes=vmem_limit),
    )(x, tgt, msk)

    numerator = jnp.sum(partials[:, 0, 0])
    return numerator / denom


def _reference(inp, target, mask, smoothing):
    V = inp.shape[-1]
    x = inp.reshape(-1, V).astype(jnp.float32)
    tgt = target.reshape(-1).astype(jnp.int32)
    msk = mask.reshape(-1).astype(jnp.float32)
    smooth_val = smoothing / (V - 1)
    confidence = 1.0 - smoothing
    td = jnp.full_like(x, smooth_val)
    td = td.at[jnp.arange(x.shape[0]), tgt].set(confidence)
    term = jnp.where(td > 0, td * (jnp.log(jnp.maximum(td, 1e-30)) - x), 0.0)
    row = term.sum(axis=1)
    return (row * msk).sum() / msk.sum()


if __name__ == "__main__":
    smoothing = 0.1
    key = jax.random.PRNGKey(0)

    def make(k, B, T, V, dtype=jnp.float32):
        k1, k2, k3 = jax.random.split(k, 3)
        logits = jax.random.normal(k1, (B, T, V), dtype=jnp.float32)
        inp = jax.nn.log_softmax(logits, axis=-1).astype(dtype)
        target = jax.random.randint(k2, (B, T), 0, V, dtype=jnp.int32)
        mask = (jax.random.uniform(k3, (B, T)) > 0.2).astype(jnp.float32)
        return inp, target, mask

    ka, kb, kc = jax.random.split(key, 3)

    # Case 1: small f32 (B=2, T=8, V=128).
    inp, target, mask = make(ka, 2, 8, 128)
    loss = jax.block_until_ready(label_smoothing_loss(inp, target, mask, smoothing=smoothing))
    ref = _reference(inp, target, mask, smoothing)
    assert jnp.allclose(loss, ref, rtol=1e-4, atol=1e-4), (loss, ref)

    # Case 2: odd row count (zero-mask padding path), bf16 input streamed natively.
    inp, target, mask = make(kb, 3, 7, 256, dtype=jnp.bfloat16)
    loss = jax.block_until_ready(label_smoothing_loss(inp, target, mask, smoothing=smoothing))
    ref = _reference(inp, target, mask, smoothing)
    assert jnp.allclose(loss, ref, rtol=1e-4, atol=1e-4), (loss, ref)

    # Case 3: multiple row blocks per split (accumulator across the arbitrary axis).
    inp, target, mask = make(kc, 4, 16, 128)
    loss = jax.block_until_ready(
        label_smoothing_loss(inp, target, mask, smoothing=smoothing, tile_rows=8))
    ref = _reference(inp, target, mask, smoothing)
    assert jnp.allclose(loss, ref, rtol=1e-4, atol=1e-4), (loss, ref)

    print("KERNEL_OK")
</pallas_src>

<mosaic_0001>
module attributes {stable_mosaic.version = 11 : i64} {
  func.func @_label_smoothing_kernel(%arg0: i32, %arg1: i32, %arg2: memref<8x128xf32, #tpu.memory_space<vmem>>, %arg3: memref<8x1xi32, #tpu.memory_space<vmem>>, %arg4: memref<8x1xf32, #tpu.memory_space<vmem>>, %arg5: memref<1x8x128xf32, #tpu.memory_space<vmem>>, %arg6: memref<8x1xf32, #tpu.memory_space<vmem>>) attributes {dimension_semantics = [#tpu.dimension_semantics<parallel>, #tpu.dimension_semantics<arbitrary>], iteration_bounds = array<i64: 2, 1>, scalar_prefetch = 0 : i64, scratch_operands = 1 : i64, tpu.core_type = #tpu.core_type<tc>, window_params = [{transform_indices = @transform_0, window_bounds = array<i64: 8, 128>}, {transform_indices = @transform_1, window_bounds = array<i64: 8, 1>}, {transform_indices = @transform_2, window_bounds = array<i64: 8, 1>}, {transform_indices = @transform_3, window_bounds = array<i64: 1, 8, 128>}]} {
    %c0_i32 = arith.constant 0 : i32
    %0 = arith.cmpi eq, %arg1, %c0_i32 : i32
    %1 = arith.extui %0 : i1 to i32
    %c0_i32_0 = arith.constant 0 : i32
    %2 = arith.cmpi ne, %1, %c0_i32_0 : i32
    scf.if %2 {
      %cst_17 = arith.constant 0.000000e+00 : f32
      %29 = vector.broadcast %cst_17 : f32 to vector<8x1xf32>
      %c0_18 = arith.constant 0 : index
      %c0_19 = arith.constant 0 : index
      %30 = vector.load %arg6[%c0_18, %c0_19] : memref<8x1xf32, #tpu.memory_space<vmem>>, vector<8x1xf32>
      tpu.vector_store %arg6[%c0_18, %c0_19], %29 {strides = array<i32>} : memref<8x1xf32, #tpu.memory_space<vmem>>, vector<8x1xf32>,
    } else {
    }
    %c0 = arith.constant 0 : index
    %c0_1 = arith.constant 0 : index
    %3 = vector.load %arg2[%c0, %c0_1] : memref<8x128xf32, #tpu.memory_space<vmem>>, vector<8x128xf32>
    %c0_2 = arith.constant 0 : index
    %c0_3 = arith.constant 0 : index
    %4 = vector.load %arg3[%c0_2, %c0_3] : memref<8x1xi32, #tpu.memory_space<vmem>>, vector<8x1xi32>
    %c0_4 = arith.constant 0 : index
    %c0_5 = arith.constant 0 : index
    %5 = vector.load %arg4[%c0_4, %c0_5] : memref<8x1xf32, #tpu.memory_space<vmem>>, vector<8x1xf32>
    %6 = tpu.iota {dimensions = array<i32: 1>} : vector<8x128xi32>
    %7 = vector.broadcast %4 : vector<8x1xi32> to vector<8x128xi32>
    %8 = arith.cmpi eq, %6, %7 : vector<8x128xi32>
    %cst = arith.constant 0.000000e+00 : f32
    %9 = vector.broadcast %cst : f32 to vector<8x128xf32>
    %10 = arith.select %8, %3, %9 : vector<8x128xi1>, vector<8x128xf32>
    %cst_6 = arith.constant dense<0.000000e+00> : vector<8xf32>
    %11 = vector.multi_reduction <add>, %10, %cst_6 [1] : vector<8x128xf32> to vector<8xf32>
    %12 = vector.shape_cast %11 : vector<8xf32> to vector<8x1xf32>
    %cst_7 = arith.constant dense<0.000000e+00> : vector<8xf32>
    %13 = vector.multi_reduction <add>, %3, %cst_7 [1] : vector<8x128xf32> to vector<8xf32>
    %14 = vector.shape_cast %13 : vector<8xf32> to vector<8x1xf32>
    %cst_8 = arith.constant 7.87401571E-4 : f32
    %15 = vector.broadcast %cst_8 : f32 to vector<8x1xf32>
    %16 = arith.mulf %15, %14 : vector<8x1xf32>
    %cst_9 = arith.constant -0.809501707 : f32
    %17 = vector.broadcast %cst_9 : f32 to vector<8x1xf32>
    %18 = arith.subf %17, %16 : vector<8x1xf32>
    %cst_10 = arith.constant 0.899212599 : f32
    %19 = vector.broadcast %cst_10 : f32 to vector<8x1xf32>
    %20 = arith.mulf %19, %12 : vector<8x1xf32>
    %21 = arith.subf %18, %20 : vector<8x1xf32>
    %c0_11 = arith.constant 0 : index
    %c0_12 = arith.constant 0 : index
    %22 = vector.load %arg6[%c0_11, %c0_12] : memref<8x1xf32, #tpu.memory_space<vmem>>, vector<8x1xf32>
    %23 = arith.mulf %21, %5 : vector<8x1xf32>
    %24 = arith.addf %22, %23 : vector<8x1xf32>
    %c0_13 = arith.constant 0 : index
    %c0_14 = arith.constant 0 : index
    %25 = vector.load %arg6[%c0_13, %c0_14] : memref<8x1xf32, #tpu.memory_space<vmem>>, vector<8x1xf32>
    tpu.vector_store %arg6[%c0_13, %c0_14], %24 {strides = array<i32>} : memref<8x1xf32, #tpu.memory_space<vmem>>, vector<8x1xf32>,
    %c0_i32_15 = arith.constant 0 : i32
    %26 = arith.cmpi eq, %arg1, %c0_i32_15 : i32
    %27 = arith.extui %26 : i1 to i32
    %c0_i32_16 = arith.constant 0 : i32
    %28 = arith.cmpi ne, %27, %c0_i32_16 : i32
    scf.if %28 {
      %c0_17 = arith.constant 0 : index
      %c0_18 = arith.constant 0 : index
      %29 = vector.load %arg6[%c0_17, %c0_18] : memref<8x1xf32, #tpu.memory_space<vmem>>, vector<8x1xf32>
      %30 = vector.shape_cast %29 : vector<8x1xf32> to vector<1x8x1xf32>
      %cst_19 = arith.constant dense<0.000000e+00> : vector<1xf32>
      %31 = vector.multi_reduction <add>, %30, %cst_19 [1, 2] : vector<1x8x1xf32> to vector<1xf32>
      %32 = vector.shape_cast %31 : vector<1xf32> to vector<1x1x1xf32>
      %33 = vector.extract %32[0, 0, 0] : f32 from vector<1x1x1xf32>
      %34 = vector.broadcast %33 : f32 to vector<1x8x128xf32>
      %c0_20 = arith.constant 0 : index
      %c0_21 = arith.constant 0 : index
      %c0_22 = arith.constant 0 : index
      %35 = vector.load %arg5[%c0_20, %c0_21, %c0_22] : memref<1x8x128xf32, #tpu.memory_space<vmem>>, vector<1x8x128xf32>
      tpu.vector_store %arg5[%c0_20, %c0_21, %c0_22], %34 {strides = array<i32>} : memref<1x8x128xf32, #tpu.memory_space<vmem>>, vector<1x8x128xf32>,
    } else {
    }
    return
  }
  func.func @transform_0(%arg0: i32, %arg1: i32) -> (i32, i32) {
    %c1_i32 = arith.constant 1 : i32
    %0 = arith.muli %arg0, %c1_i32 : i32
    %1 = arith.addi %0, %arg1 : i32
    %c0_i32 = arith.constant 0 : i32
    %c0_i32_0 = arith.constant 0 : i32
    return %1, %c0_i32 : i32, i32
  }
  func.func @transform_1(%arg0: i32, %arg1: i32) -> (i32, i32) {
    %c1_i32 = arith.constant 1 : i32
    %0 = arith.muli %arg0, %c1_i32 : i32
    %1 = arith.addi %0, %arg1 : i32
    %c0_i32 = arith.constant 0 : i32
    %c0_i32_0 = arith.constant 0 : i32
    return %1, %c0_i32 : i32, i32
  }
  func.func @transform_2(%arg0: i32, %arg1: i32) -> (i32, i32) {
    %c1_i32 = arith.constant 1 : i32
    %0 = arith.muli %arg0, %c1_i32 : i32
    %1 = arith.addi %0, %arg1 : i32
    %c0_i32 = arith.constant 0 : i32
    %c0_i32_0 = arith.constant 0 : i32
    return %1, %c0_i32 : i32, i32
  }
  func.func @transform_3(%arg0: i32, %arg1: i32) -> (i32, i32, i32) {
    %c0_i32 = arith.constant 0 : i32
    %c0_i32_0 = arith.constant 0 : i32
    %c0_i32_1 = arith.constant 0 : i32
    return %arg0, %c0_i32, %c0_i32_0 : i32, i32, i32
  }
}

</mosaic_0001>

<llo_original>
// kernel: tpu_custom_call.1
$region0: #{tpu_custom_call.1}
  #allocation0 [shape = 'u32[]', space=smem, size = 0x4, offset = 0x4, fixed_abs, tag = 'smem constant byte address 0x4 - core index']
  #allocation1 [shape = 'u32[72,128]{1,0:T(1,128)}', space=vmem, size = 0x9000, scoped, tag = 'internal scratch']
  #allocation2 [shape = 'f32[8,1]{1,0:T(8,128)}', space=vmem, size = 0x1000, scoped, tag = 'scratch operand']
  %s0 = inlined_call_operand.vmem [shape: f32[16,128], index: 0, kind: input, shape index: {}]
  %s1 = inlined_call_operand.vmem [shape: s32[16,1], index: 1, kind: input, shape index: {}]
  %s2 = inlined_call_operand.vmem [shape: f32[16,1], index: 2, kind: input, shape index: {}]
  %s3 = inlined_call_operand.hbm [shape: f32[2,8,128], index: 3, kind: output, shape index: {}]
  %s4 = sld [smem:[#allocation0]]
  $region53: #{tpu_custom_call.1} parent=0
    _
  %s6 = ssub.s32 1, %s4
  %s7 = scalar_select 0, %s6, %s4
  $region1: #{tpu_custom_call.1} parent=0
    #allocation3 [shape = 'u8[8192]{0}', space=vmem, size = 0x2000, scoped, tag = 'output window, operand 0']
    #allocation4 [shape = 's32[2]{0}', space=sflag, size = 0x8, scoped, tag = 'scoped memory for tpu_custom_call.1']
    %8 = vsyncpa [#allocation4], 0
    %s9 = scalar_lea.sflag [#allocation4], 1
    %10 = vsyncpa %s9, 0
    loop: start=0, step=1, limit=4
    $region2: #{tpu_custom_call.1} parent=1 // loop_pre_header
      _
    $region3: #{tpu_custom_call.1} parent=1 // loop_header
      %s12 = sphi 0, %s16
      %p13 = scmp.ge.s32.totalorder %s12, 4
      %s19 = sphi 0, %s31
      %s20 = sphi 0, %s27
      %s21 = sphi 0, %s19
      %s22 = sphi 0, %s20
      %s23 = sphi 0, %s21
      %s24 = sphi 0, %s22
      %s36 = sphi 0, %s38
      %s39 = sphi 0, %s36
      %s40 = sphi 0, %s39
      %s56 = sphi 0, %s40
      %s64 = sphi 0, %s66
      %s67 = sphi 0, %s64
      %s68 = sphi 0, %s67
      %s84 = sphi 0, %s68
      %s92 = sphi 0, %s94
      %s95 = sphi 0, %s92
      %s96 = sphi 0, %s95
      %s112 = sphi 0, %s96
      %s118 = sphi 0, %s120
      %s121 = sphi 0, %s118
      %s122 = sphi 0, %s121
      %s138 = sphi 0, %s122
    $region4: #{tpu_custom_call.1} parent=1 // loop_header_branch
      %15 = sbr.rel (%p13) target = $region8
    $region5: #{tpu_custom_call.1} parent=1 // loop_body
      %s17 = ssub.s32 %s12, 1
      %s18 = ssub.s32 %s12, 2
      %s25 = sadd.s32 1, %s20
      %p26 = scmp.ge.s32.totalorder %s25, 1
      %s27 = scalar_select %p26, 0, %s25
      %s28 = sadd.s32 1, %s19
      %s29 = scalar_select %p26, %s28, %s19
      %p30 = scmp.ge.s32.totalorder %s29, 2
      %s31 = scalar_select %p30, 0, %s29
      %s32 = sadd.s32 %s19, %s20
      %s33 = sadd.s32 %s31, %s27
      %s34 = ssub.s32 %s32, %s33
      %p35 = scmp.eq.s32.totalorder %s34, 0
      %s37 = sadd.s32 %s36, 1
      %s38 = scalar_select %p35, %s36, %s37
      %p41 = pneg %p35
      %p42 = scmp.eq.s32.totalorder %s12, 1
      %p43 = por %p41, %p42
      %p44 = scmp.ne.s32.totalorder %s36, %s39
      %p45 = scmp.eq.s32.totalorder %s12, 0
      %p46 = por %p44, %p45
      %p47 = scmp.ne.s32.totalorder %s36, %s39
      %p48 = scmp.eq.s32.totalorder %s17, 1
      %p49 = por %p47, %p48
      %p50 = scmp.ne.s32.totalorder %s39, %s40
      %p51 = scmp.eq.s32.totalorder %s17, 0
      %p52 = por %p50, %p51
      %p53 = scmp.ne.s32.totalorder %s39, %s40
      %p54 = scmp.eq.s32.totalorder %s18, 1
      %p55 = por %p53, %p54
      %p57 = scmp.ne.s32.totalorder %s40, %s56
      %p58 = scmp.eq.s32.totalorder %s18, 0
      %p59 = por %p57, %p58
      %s60 = sadd.s32 %s19, %s20
      %s61 = sadd.s32 %s31, %s27
      %s62 = ssub.s32 %s60, %s61
      %p63 = scmp.eq.s32.totalorder %s62, 0
      %s65 = sadd.s32 %s64, 1
      %s66 = scalar_select %p63, %s64, %s65
      %p69 = pneg %p63
      %p70 = scmp.eq.s32.totalorder %s12, 1
      %p71 = por %p69, %p70
      %p72 = scmp.ne.s32.totalorder %s64, %s67
      %p73 = scmp.eq.s32.totalorder %s12, 0
      %p74 = por %p72, %p73
      %p75 = scmp.ne.s32.totalorder %s64, %s67
      %p76 = scmp.eq.s32.totalorder %s17, 1
      %p77 = por %p75, %p76
      %p78 = scmp.ne.s32.totalorder %s67, %s68
      %p79 = scmp.eq.s32.totalorder %s17, 0
      %p80 = por %p78, %p79
      %p81 = scmp.ne.s32.totalorder %s67, %s68
      %p82 = scmp.eq.s32.totalorder %s18, 1
      %p83 = por %p81, %p82
      %p85 = scmp.ne.s32.totalorder %s68, %s84
      %p86 = scmp.eq.s32.totalorder %s18, 0
      %p87 = por %p85, %p86
      %s88 = sadd.s32 %s19, %s20
      %s89 = sadd.s32 %s31, %s27
      %s90 = ssub.s32 %s88, %s89
      %p91 = scmp.eq.s32.totalorder %s90, 0
      %s93 = sadd.s32 %s92, 1
      %s94 = scalar_select %p91, %s92, %s93
      %p97 = pneg %p91
      %p98 = scmp.eq.s32.totalorder %s12, 1
      %p99 = por %p97, %p98
      %p100 = scmp.ne.s32.totalorder %s92, %s95
      %p101 = scmp.eq.s32.totalorder %s12, 0
      %p102 = por %p100, %p101
      %p103 = scmp.ne.s32.totalorder %s92, %s95
      %p104 = scmp.eq.s32.totalorder %s17, 1
      %p105 = por %p103, %p104
      %p106 = scmp.ne.s32.totalorder %s95, %s96
      %p107 = scmp.eq.s32.totalorder %s17, 0
      %p108 = por %p106, %p107
      %p109 = scmp.ne.s32.totalorder %s95, %s96
      %p110 = scmp.eq.s32.totalorder %s18, 1
      %p111 = por %p109, %p110
      %p113 = scmp.ne.s32.totalorder %s96, %s112
      %p114 = scmp.eq.s32.totalorder %s18, 0
      %p115 = por %p113, %p114
      %s116 = ssub.s32 %s19, %s31
      %p117 = scmp.eq.s32.totalorder %s116, 0
      %s119 = sadd.s32 %s118, 1
      %s120 = scalar_select %p117, %s118, %s119
      %p123 = pneg %p117
      %p124 = scmp.eq.s32.totalorder %s12, 1
      %p125 = por %p123, %p124
      %p126 = scmp.ne.s32.totalorder %s118, %s121
      %p127 = scmp.eq.s32.totalorder %s12, 0
      %p128 = por %p126, %p127
      %p129 = scmp.ne.s32.totalorder %s118, %s121
      %p130 = scmp.eq.s32.totalorder %s17, 1
      %p131 = por %p129, %p130
      %p132 = scmp.ne.s32.totalorder %s121, %s122
      %p133 = scmp.eq.s32.totalorder %s17, 0
      %p134 = por %p132, %p133
      %p135 = scmp.ne.s32.totalorder %s121, %s122
      %p136 = scmp.eq.s32.totalorder %s18, 1
      %p137 = por %p135, %p136
      %p139 = scmp.ne.s32.totalorder %s122, %s138
      %p140 = scmp.eq.s32.totalorder %s18, 0
      %p141 = por %p139, %p140
      %p142 = scmp.le.s32.totalorder 1, %s12
      %p143 = scmp.lt.s32.totalorder %s12, 3
      %p144 = pnand %p142, %p143
      %p145 = pneg %p144
      // Predicated region
      $region9: #{tpu_custom_call.1} parent=5 // pred_check
        _
      $region10: #{tpu_custom_call.1} parent=5 // pred_check_branch
        %147 = sbr.rel (%p144) target = $region12
      $region11: #{tpu_custom_call.1} parent=5 // pred_region
        %s148 = ssub.s32 %s12, 1
      $region12: #{tpu_custom_call.1} parent=5 // pred_fallthru
        _
      %p149 = scmp.lt.s32.totalorder %s12, 2
      // Predicated region
      $region13: #{tpu_custom_call.1} parent=5 // pred_check
        %p150 = pneg %p149
      $region14: #{tpu_custom_call.1} parent=5 // pred_check_branch
        %152 = sbr.rel (%p150) target = $region16
      $region15: #{tpu_custom_call.1} parent=5 // pred_region
        // Predicated region
        $region17: #{tpu_custom_call.1} parent=15 // pred_check
          %p153 = pneg %p46
        $region18: #{tpu_custom_call.1} parent=15 // pred_check_branch
          %155 = sbr.rel (%p153) target = $region20
        $region19: #{tpu_custom_call.1} parent=15 // pred_region
          %s156 = sadd.s32 %s19, %s20
          %p157 = scmp.lt.s32.totalorder %s156, 1
          %s158 = scalar_select %p157, %s156, 1
          %s159 = smul.addr %s158, 8
          %s160 = scalar_lea.vmem %s0, %s159
          %s161 = sadd.s32 %s19, %s20
        $region20: #{tpu_custom_call.1} parent=15 // pred_fallthru
          _
        // Predicated region
        $region21: #{tpu_custom_call.1} parent=15 // pred_check
          %p162 = pneg %p74
        $region22: #{tpu_custom_call.1} parent=15 // pred_check_branch
          %164 = sbr.rel (%p162) target = $region24
        $region23: #{tpu_custom_call.1} parent=15 // pred_region
          %s165 = sadd.s32 %s19, %s20
          %p166 = scmp.lt.s32.totalorder %s165, 1
          %s167 = scalar_select %p166, %s165, 1
          %s168 = smul.addr %s167, 8
          %s169 = scalar_lea.vmem %s1, %s168
          %s170 = sadd.s32 %s19, %s20
        $region24: #{tpu_custom_call.1} parent=15 // pred_fallthru
          _
        // Predicated region
        $region25: #{tpu_custom_call.1} parent=15 // pred_check
          %p171 = pneg %p102
        $region26: #{tpu_custom_call.1} parent=15 // pred_check_branch
          %173 = sbr.rel (%p171) target = $region28
        $region27: #{tpu_custom_call.1} parent=15 // pred_region
          %s174 = sadd.s32 %s19, %s20
          %p175 = scmp.lt.s32.totalorder %s174, 1
          %s176 = scalar_select %p175, %s174, 1
          %s177 = smul.addr %s176, 8
          %s178 = scalar_lea.vmem %s2, %s177
          %s179 = sadd.s32 %s19, %s20
        $region28: #{tpu_custom_call.1} parent=15 // pred_fallthru
          _
      $region16: #{tpu_custom_call.1} parent=5 // pred_fallthru
        _
      %p180 = scmp.le.s32.totalorder 1, %s12
      %p181 = scmp.lt.s32.totalorder %s12, 3
      %p182 = pnand %p180, %p181
      %p183 = pneg %p182
      // Predicated region
      $region29: #{tpu_custom_call.1} parent=5 // pred_check
        _
      $region30: #{tpu_custom_call.1} parent=5 // pred_check_branch
        %185 = sbr.rel (%p182) target = $region32
      $region31: #{tpu_custom_call.1} parent=5 // pred_region
        %s186 = ssub.s32 %s12, 1
        %s187 = sadd.s32 %s21, %s22
        %p188 = scmp.lt.s32.totalorder %s187, 1
        %s189 = scalar_select %p188, %s187, 1
        %s190 = smul.addr %s189, 8
        %s191 = scalar_lea.vmem %s0, %s190
        %p192 = pneg %p52
        %p193 = pneg %p49
        %s194 = sadd.s32 %s21, %s22
        %p195 = scmp.lt.s32.totalorder %s194, 1
        %s196 = scalar_select %p195, %s194, 1
        %s197 = smul.addr %s196, 8
        %s198 = scalar_lea.vmem %s1, %s197
        %p199 = pneg %p80
        %p200 = pneg %p77
        %s201 = sadd.s32 %s21, %s22
        %p202 = scmp.lt.s32.totalorder %s201, 1
        %s203 = scalar_select %p202, %s201, 1
        %s204 = smul.addr %s203, 8
        %s205 = scalar_lea.vmem %s2, %s204
        %p206 = pneg %p108
        %p207 = pneg %p105
        %p208 = pneg %p134
        %p209 = pneg %p131
        %s210 = sand.u32 %s121, 1
        %s211 = scalar_lea.sflag [#allocation4], %s210
        %s212 = sand.u32 %s121, 1
        %s213 = smul.addr %s212, 8
        %s214 = scalar_lea.vmem [#allocation3], %s213
        %s215 = sadd.s32 %s21, %s22
        %p216 = scmp.lt.s32.totalorder %s215, 1
        %s217 = scalar_select %p216, %s215, 1
        %s218 = smul.addr %s217, 8
        %s219 = scalar_lea.vmem %s0, %s218
        %s220 = sadd.s32 %s21, %s22
        %s221 = sadd.s32 %s21, %s22
        %p222 = scmp.lt.s32.totalorder %s221, 1
        %s223 = scalar_select %p222, %s221, 1
        %s224 = smul.addr %s223, 8
        %s225 = scalar_lea.vmem %s1, %s224
        %s226 = sadd.s32 %s21, %s22
        %s227 = sadd.s32 %s21, %s22
        %p228 = scmp.lt.s32.totalorder %s227, 1
        %s229 = scalar_select %p228, %s227, 1
        %s230 = smul.addr %s229, 8
        %s231 = scalar_lea.vmem %s2, %s230
        %s232 = sadd.s32 %s21, %s22
        %p233 = scmp.eq.s32.totalorder %s22, 0
        // Predicated region
        $region33: #{tpu_custom_call.1} parent=31 // pred_check
          %p234 = pneg %p233
        $region34: #{tpu_custom_call.1} parent=31 // pred_check_branch
          %236 = sbr.rel (%p234) target = $region36
        $region35: #{tpu_custom_call.1} parent=31 // pred_region
          %vm237 = vcmask 7168
          %238 = vst.msk [vmem:[#allocation2] sm:$0xff] %vm237, 0.0
        $region36: #{tpu_custom_call.1} parent=31 // pred_fallthru
          _
        %v239 = vld [vmem:[%s219] sm:$0xff]
        %v240 = vld [vmem:[%s225] sm:$0xff]
        %v241 = vld [vmem:[%s231] sm:$0xff]
        %v242 = vlaneseq
        %v243 = vand.u32 %v242, 127
        %244 = vset.pattern.permute.xlu0 0
        %245 = vperm.xlu0 %244, %v240
        %v246 = vpop.permute.xlu0 %245
        %vm247 = vcmp.eq.s32.totalorder %v243, %v246
        %v248 = vsel %vm247, %v239, 0.0
        %249 = vadd.xlane.f32.xlu0 %v248
        %v250 = vpop.xlane.xlu0 %249
        %251 = vadd.xlane.f32.xlu0 %v239
        %v252 = vpop.xlane.xlu0 %251
        %v253 = vmul.f32 %v252, 0.0007874016
        %v254 = vsub.f32 -0.8095017, %v253
        %v255 = vmul.f32 %v250, 0.8992126
        %v256 = vsub.f32 %v254, %v255
        %v257 = vld [vmem:[#allocation2] sm:$0xff]
        %v258 = vmul.f32 %v256, %v241
        %v259 = vadd.f32 %v257, %v258
        %vm260 = vcmask 7168
        %261 = vst.msk [vmem:[#allocation2] sm:$0xff] %vm260, %v259
        // Predicated region
        $region37: #{tpu_custom_call.1} parent=31 // pred_check
          %p262 = pneg %p233
        $region38: #{tpu_custom_call.1} parent=31 // pred_check_branch
          %264 = sbr.rel (%p262) target = $region40
        $region39: #{tpu_custom_call.1} parent=31 // pred_region
          %v265 = vld [vmem:[#allocation2] sm:$0xff]
          %v266 = vsel %vm260, %v265, 0.0
          %267 = vadd.xlane.f32.xlu0 %v266
          %v268 = vpop.xlane.xlu0 %267
          %v269 = vrot.slane %v268, 4
          %v270 = vadd.f32 %v268, %v269
          %v271 = vrot.slane %v270, 2
          %v272 = vadd.f32 %v270, %v271
          %v273 = vrot.slane %v272, 1
          %v274 = vadd.f32 %v272, %v273
          %s275 = vtos %v274
          %v276 = vstv %s275
          %277 = vst [vmem:[%s214] sm:$0xff] %v276
        $region40: #{tpu_custom_call.1} parent=31 // pred_fallthru
          _
        %s278 = sand.u32 %s121, 1
        %s279 = scalar_lea.sflag [#allocation4], %s278
        %s280 = sand.u32 %s121, 1
        %s281 = smul.addr %s280, 8
        %s282 = scalar_lea.vmem [#allocation3], %s281
        // Predicated region
        $region41: #{tpu_custom_call.1} parent=31 // pred_check
          %p283 = pneg %p131
        $region42: #{tpu_custom_call.1} parent=31 // pred_check_branch
          %285 = sbr.rel (%p283) target = $region44
        $region43: #{tpu_custom_call.1} parent=31 // pred_region
          %287 = vsyncadd %s279, 0
          %s288 = smul.addr %s21, 8
          %s289 = scalar_lea.hbm %s3, %s288
          %s291 = sshll.u32 %s282, 4
          %s292 = int_to_ptr.vmem [resolvable:$true] %s291
          %s293 = sshll.u32 %s289, 4
          %s294 = int_to_ptr.hbm [resolvable:$true] %s293
          %296 = dma.vmem_to_hbm [thread:$0]  %s292, 128, %s294, %s279
        $region44: #{tpu_custom_call.1} parent=31 // pred_fallthru
          _
      $region32: #{tpu_custom_call.1} parent=5 // pred_fallthru
        _
      %p297 = scmp.le.s32.totalorder 2, %s12
      // Predicated region
      $region45: #{tpu_custom_call.1} parent=5 // pred_check
        %p298 = pneg %p297
      $region46: #{tpu_custom_call.1} parent=5 // pred_check_branch
        %300 = sbr.rel (%p298) target = $region48
      $region47: #{tpu_custom_call.1} parent=5 // pred_region
        %s301 = ssub.s32 %s12, 2
        // Predicated region
        $region49: #{tpu_custom_call.1} parent=47 // pred_check
          %p302 = pneg %p137
        $region50: #{tpu_custom_call.1} parent=47 // pred_check_branch
          %304 = sbr.rel (%p302) target = $region52
        $region51: #{tpu_custom_call.1} parent=47 // pred_region
          %s305 = sand.u32 %s122, 1
          %s306 = scalar_lea.sflag [#allocation4], %s305
          %s307 = sand.u32 %s122, 1
          %s308 = smul.addr %s307, 8
          %s309 = scalar_lea.vmem [#allocation3], %s308
          %311 = dma.done %s306, 128
        $region52: #{tpu_custom_call.1} parent=47 // pred_fallthru
          _
      $region48: #{tpu_custom_call.1} parent=5 // pred_fallthru
        _
    $region6: #{tpu_custom_call.1} parent=1 // loop_footer
      %s16 = sadd.s32 1, %s12
    $region7: #{tpu_custom_call.1} parent=1 // loop_footer_branch
      %11 = sbr.rel target = $region3
    $region8: #{tpu_custom_call.1} parent=1 // loop_exit
      _
    %312 = vsyncpa [#allocation4], 1
    %s313 = scalar_lea.sflag [#allocation4], 1
    %314 = vsyncpa %s313, 1

</llo_original>
